<compile_context>
chip_gen: v5e
topology: v5e:2x2
jax: 0.10.0
libtpu: 0.0.40
codegen_flags: <defaults>
</compile_context>

<pallas_src>
import jax
import jax.numpy as jnp
from jax import lax
from jax.experimental import pallas as pl
from jax.experimental.pallas import tpu as pltpu


# Explicit scoped-VMEM limit that is safe on every generation
# (v7x: 64 MiB physical; v5e/v6e: 128 MiB physical).
_VMEM_LIMIT_BYTES = 32 * 1024 * 1024
# Working-set budget for the whole-array (no-grid) path; leaves headroom for
# I/O buffering and compiler scratch under the limit above.
_NOGRID_VMEM_BUDGET = 16 * 1024 * 1024


def _vmem_spec():
    return pl.BlockSpec(memory_space=pltpu.MemorySpace.VMEM)


def _cost(batch, in_dim, out_dim, bytes_per_elt=4):
    return pl.CostEstimate(
        flops=2 * batch * in_dim * out_dim,
        transcendentals=0,
        bytes_accessed=bytes_per_elt
        * (batch * in_dim + in_dim * out_dim + batch * out_dim),
    )


def _qnet_kernel(x_ref, w_ref, o_ref):
    # x: (bt, in_dim); w: (out_dim, in_dim) (PyTorch layout, no wrapper transpose).
    # Contract dim 1 of both => x @ W.T with f32 accumulation on the MXU.
    o_ref[...] = lax.dot_general(
        x_ref[...],
        w_ref[...],
        dimension_numbers=(((1,), (1,)), ((), ())),
        preferred_element_type=jnp.float32,
    ).astype(o_ref.dtype)


def _qnet_argmax_kernel(x_ref, w_ref, q_ref, a_ref):
    # Same matmul, plus a fused greedy action (argmax over out_dim) so the
    # Q-values don't need to round-trip through HBM for action selection.
    q = lax.dot_general(
        x_ref[...],
        w_ref[...],
        dimension_numbers=(((1,), (1,)), ((), ())),
        preferred_element_type=jnp.float32,
    )
    q_ref[...] = q.astype(q_ref.dtype)
    out_dim = q.shape[1]
    m = jnp.max(q, axis=1, keepdims=True)
    idx = lax.broadcasted_iota(jnp.int32, q.shape, 1)
    # First index attaining the max (same tie-break as jnp/torch argmax).
    a_ref[...] = jnp.min(jnp.where(q >= m, idx, out_dim), axis=1, keepdims=True)


def _qnet_states_kernel(s_ref, w_ref, o_ref):
    # One-hot fast path: integer states (bt, 1) int32. The one-hot mask is
    # built in VMEM (iota compare), so only 4 B/row come from HBM instead of
    # a 64 B/row one-hot f32 matrix.
    bt = s_ref.shape[0]
    in_dim = w_ref.shape[1]
    iota = lax.broadcasted_iota(jnp.int32, (bt, in_dim), 1)
    onehot = (iota == s_ref[...]).astype(w_ref.dtype)
    o_ref[...] = lax.dot_general(
        onehot,
        w_ref[...],
        dimension_numbers=(((1,), (1,)), ((), ())),
        preferred_element_type=jnp.float32,
    ).astype(o_ref.dtype)


def qnet_forward(x, weight, *, batch_tile=4096, nogrid_rows=None,
                 return_argmax=False, compute_dtype=None):
    """QNet forward: x (B, input_dim), weight (output_dim, input_dim) [PyTorch layout].

    Returns (B, output_dim) Q-values, or (q_values, actions[(B,1) int32]) when
    `return_argmax=True`. `compute_dtype=jnp.bfloat16` halves input HBM traffic
    (f32 accumulation / f32 output preserved).
    """
    B, in_dim = x.shape
    out_dim, in_dim_w = weight.shape
    assert in_dim == in_dim_w, (in_dim, in_dim_w)

    out_dtype = x.dtype
    if compute_dtype is not None:
        x = x.astype(compute_dtype)
        weight = weight.astype(compute_dtype)
    elt = jnp.dtype(x.dtype).itemsize

    # No-grid threshold: as many rows as comfortably fit the VMEM budget
    # (~100k rows for the f32 FrozenLake shapes) -> avoids per-tile grid
    # overhead on this launch-bound kernel.
    if nogrid_rows is None:
        per_row = elt * (in_dim + out_dim) + 4  # x row + q row + int32 action
        nogrid_rows = max(8, _NOGRID_VMEM_BUDGET // (2 * per_row))

    q_shape = jax.ShapeDtypeStruct((B, out_dim), out_dtype)
    a_shape = jax.ShapeDtypeStruct((B, 1), jnp.int32)
    cost = _cost(B, in_dim, out_dim, elt)

    if B <= nogrid_rows:
        # Single invocation, no grid, whole operands resident in VMEM.
        cparams = pltpu.CompilerParams(vmem_limit_bytes=_VMEM_LIMIT_BYTES)
        if return_argmax:
            return pl.pallas_call(
                _qnet_argmax_kernel,
                out_shape=(q_shape, a_shape),
                in_specs=[_vmem_spec(), _vmem_spec()],
                out_specs=(_vmem_spec(), _vmem_spec()),
                compiler_params=cparams,
                cost_estimate=cost,
            )(x, weight)
        return pl.pallas_call(
            _qnet_kernel,
            out_shape=q_shape,
            in_specs=[_vmem_spec(), _vmem_spec()],
            out_specs=_vmem_spec(),
            compiler_params=cparams,
            cost_estimate=cost,
        )(x, weight)

    # Very-large-batch path: tile over B with big tiles; "parallel" lets v7x's
    # two TensorCores split the grid (no-op on v5e/v6e).
    bt = max(8, (min(batch_tile, B) // 8) * 8)
    grid = (pl.cdiv(B, bt),)
    cparams = pltpu.CompilerParams(
        dimension_semantics=("parallel",),
        vmem_limit_bytes=_VMEM_LIMIT_BYTES,
    )
    x_spec = pl.BlockSpec((bt, in_dim), lambda i: (i, 0))
    w_spec = pl.BlockSpec((out_dim, in_dim), lambda i: (0, 0))
    q_spec = pl.BlockSpec((bt, out_dim), lambda i: (i, 0))
    if return_argmax:
        a_spec = pl.BlockSpec((bt, 1), lambda i: (i, 0))
        return pl.pallas_call(
            _qnet_argmax_kernel,
            out_shape=(q_shape, a_shape),
            grid=grid,
            in_specs=[x_spec, w_spec],
            out_specs=(q_spec, a_spec),
            compiler_params=cparams,
            cost_estimate=cost,
        )(x, weight)
    return pl.pallas_call(
        _qnet_kernel,
        out_shape=q_shape,
        grid=grid,
        in_specs=[x_spec, w_spec],
        out_specs=q_spec,
        compiler_params=cparams,
        cost_estimate=cost,
    )(x, weight)


def qnet_forward_from_states(states, weight):
    """One-hot fast path: states (B,) int32 in [0, input_dim) -> (B, output_dim).

    Equivalent to qnet_forward(one_hot(states), weight) but ships only the
    integer indices from HBM and builds the one-hot mask in VMEM.
    """
    B = states.shape[0]
    out_dim, in_dim = weight.shape
    s2 = states.astype(jnp.int32).reshape(B, 1)
    return pl.pallas_call(
        _qnet_states_kernel,
        out_shape=jax.ShapeDtypeStruct((B, out_dim), weight.dtype),
        in_specs=[_vmem_spec(), _vmem_spec()],
        out_specs=_vmem_spec(),
        compiler_params=pltpu.CompilerParams(vmem_limit_bytes=_VMEM_LIMIT_BYTES),
        cost_estimate=_cost(B, in_dim, out_dim),
    )(s2, weight)


if __name__ == "__main__":
    # FrozenLake: 16 one-hot states -> 4 action Q-values.
    input_dim, output_dim = 16, 4
    batch = 2

    key = jax.random.PRNGKey(0)
    k_w, k_x = jax.random.split(key)

    # nn.init.uniform_(weight, 0.0, 0.01), PyTorch weight shape (out, in).
    weight = jax.random.uniform(
        k_w, (output_dim, input_dim), dtype=jnp.float32, minval=0.0, maxval=0.01
    )

    # --- small (RL inner-loop) path: one-hot states, no grid ----------------
    states = jnp.array([3, 7], dtype=jnp.int32)
    x_small = jax.nn.one_hot(states, input_dim, dtype=jnp.float32)
    ref_small = x_small @ weight.T

    q_small = qnet_forward(x_small, weight)
    jax.block_until_ready(q_small)
    assert q_small.shape == (batch, output_dim)
    assert jnp.allclose(q_small, ref_small, atol=1e-6), (q_small, ref_small)

    # --- fused greedy-action output -----------------------------------------
    q_fused, act = qnet_forward(x_small, weight, return_argmax=True)
    jax.block_until_ready(act)
    assert jnp.allclose(q_fused, ref_small, atol=1e-6)
    assert jnp.array_equal(act[:, 0], jnp.argmax(ref_small, axis=1)), act

    # --- integer-state one-hot fast path -------------------------------------
    q_states = qnet_forward_from_states(states, weight)
    jax.block_until_ready(q_states)
    assert jnp.allclose(q_states, ref_small, atol=1e-6), (q_states, ref_small)

    # --- optional bf16 inputs (f32 accumulation/output) -----------------------
    q_bf16 = qnet_forward(x_small, weight, compute_dtype=jnp.bfloat16)
    jax.block_until_ready(q_bf16)
    assert q_bf16.dtype == jnp.float32
    assert jnp.allclose(q_bf16, ref_small, atol=1e-4)

    # --- very-large-batch tiled path (forced onto the grid to exercise it) ---
    big_batch = 4096
    x_big = jax.random.normal(k_x, (big_batch, input_dim), dtype=jnp.float32)
    ref_big = x_big @ weight.T

    q_big, act_big = qnet_forward(
        x_big, weight, batch_tile=1024, nogrid_rows=1024, return_argmax=True
    )
    jax.block_until_ready(q_big)
    assert q_big.shape == (big_batch, output_dim)
    assert jnp.allclose(q_big, ref_big, atol=1e-5, rtol=1e-5), "tiled path mismatch"
    # Fused argmax must be self-consistent with the fused Q-values.
    assert jnp.array_equal(act_big[:, 0], jnp.argmax(q_big, axis=1))

    print("KERNEL_OK")
</pallas_src>

<mosaic_0001>
module attributes {stable_mosaic.version = 11 : i64} {
  func.func @_qnet_kernel(%arg0: memref<2x16xf32, #tpu.memory_space<vmem>>, %arg1: memref<4x16xf32, #tpu.memory_space<vmem>>, %arg2: memref<2x4xf32, #tpu.memory_space<vmem>>) attributes {dimension_semantics = [], scalar_prefetch = 0 : i64, scratch_operands = 0 : i64, tpu.core_type = #tpu.core_type<tc>} {
    %c0 = arith.constant 0 : index
    %c0_0 = arith.constant 0 : index
    %0 = vector.load %arg0[%c0, %c0_0] : memref<2x16xf32, #tpu.memory_space<vmem>>, vector<2x16xf32>
    %c0_1 = arith.constant 0 : index
    %c0_2 = arith.constant 0 : index
    %1 = vector.load %arg1[%c0_1, %c0_2] : memref<4x16xf32, #tpu.memory_space<vmem>>, vector<4x16xf32>
    %cst = arith.constant dense<0.000000e+00> : vector<2x4xf32>
    %2 = tpu.matmul %0, %1, %cst {dimension_numbers = #tpu.dot_dimension_numbers<[1], [1], [0], [0], [0, 0, 1, 0], [], []>} : vector<2x16xf32>, vector<4x16xf32>, vector<2x4xf32> -> vector<2x4xf32>
    %c0_3 = arith.constant 0 : index
    %c0_4 = arith.constant 0 : index
    %3 = vector.load %arg2[%c0_3, %c0_4] : memref<2x4xf32, #tpu.memory_space<vmem>>, vector<2x4xf32>
    tpu.vector_store %arg2[%c0_3, %c0_4], %2 {strides = array<i32>} : memref<2x4xf32, #tpu.memory_space<vmem>>, vector<2x4xf32>,
    return
  }
}

</mosaic_0001>

<llo_original>
// kernel: tpu_custom_call.1
$region0: #{tpu_custom_call.1}
  #allocation0 [shape = 'u32[]', space=smem, size = 0x4, offset = 0x4, fixed_abs, tag = 'smem constant byte address 0x4 - core index']
  #allocation1 [shape = 'u32[72,128]{1,0:T(1,128)}', space=vmem, size = 0x9000, scoped, tag = 'internal scratch']
  %s0 = inlined_call_operand.hbm [shape: f32[2,16], index: 0, kind: input, shape index: {}]
  %s1 = inlined_call_operand.hbm [shape: f32[4,16], index: 1, kind: input, shape index: {}]
  %s2 = inlined_call_operand.hbm [shape: f32[2,4], index: 2, kind: output, shape index: {}]
  %s3 = sld [smem:[#allocation0]]
  $region26: #{tpu_custom_call.1} parent=0
    _
  %s5 = ssub.s32 1, %s3
  %s6 = scalar_select 0, %s5, %s3
  $region1: #{tpu_custom_call.1} parent=0
    #allocation2 [shape = 'u8[1024]{0}', space=vmem, size = 0x400, scoped, tag = 'input window, operand 0, single buffered']
    #allocation3 [shape = 's32[1]{0}', space=sflag, size = 0x4, scoped, tag = 'scoped memory for tpu_custom_call.1']
    #allocation4 [shape = 's32[1]{0}', space=sflag, size = 0x4, scoped, tag = 'scoped memory for tpu_custom_call.1']
    #allocation5 [shape = 'u8[2048]{0}', space=vmem, size = 0x800, scoped, tag = 'input window, operand 1, single buffered']
    #allocation6 [shape = 's32[1]{0}', space=sflag, size = 0x4, scoped, tag = 'scoped memory for tpu_custom_call.1']
    #allocation7 [shape = 'u8[1024]{0}', space=vmem, size = 0x400, scoped, tag = 'output window, operand 0, single buffered']
    %7 = vsyncpa [#allocation3], 0
    %8 = vsyncpa [#allocation6], 0
    %9 = vsyncpa [#allocation4], 0
    // Predicated region
    $region2: #{tpu_custom_call.1} parent=1 // pred_check
      _
    $region3: #{tpu_custom_call.1} parent=1 // pred_check_branch
      %11 = sbr.rel (0) target = $region5
    $region4: #{tpu_custom_call.1} parent=1 // pred_region
      %13 = vsyncadd [#allocation3], 0
      %s15 = sshll.u32 %s0, 4
      %s16 = int_to_ptr.hbm [resolvable:$true] %s15
      %s17 = sshll.u32 [#allocation2], 4
      %s18 = int_to_ptr.vmem [resolvable:$true] %s17
      %20 = dma.hbm_to_vmem [thread:$0]  %s16, 32, %s18, [#allocation3]
    $region5: #{tpu_custom_call.1} parent=1 // pred_fallthru
      _
    // Predicated region
    $region6: #{tpu_custom_call.1} parent=1 // pred_check
      _
    $region7: #{tpu_custom_call.1} parent=1 // pred_check_branch
      %22 = sbr.rel (0) target = $region9
    $region8: #{tpu_custom_call.1} parent=1 // pred_region
      %24 = vsyncadd [#allocation6], 0
      %s26 = sshll.u32 %s1, 4
      %s27 = int_to_ptr.hbm [resolvable:$true] %s26
      %s28 = sshll.u32 [#allocation5], 4
      %s29 = int_to_ptr.vmem [resolvable:$true] %s28
      %31 = dma.hbm_to_vmem [thread:$0]  %s27, 64, %s29, [#allocation6]
    $region9: #{tpu_custom_call.1} parent=1 // pred_fallthru
      _
    // Predicated region
    $region10: #{tpu_custom_call.1} parent=1 // pred_check
      _
    $region11: #{tpu_custom_call.1} parent=1 // pred_check_branch
      %33 = sbr.rel (0) target = $region13
    $region12: #{tpu_custom_call.1} parent=1 // pred_region
      %35 = dma.done [#allocation3], 32
    $region13: #{tpu_custom_call.1} parent=1 // pred_fallthru
      _
    // Predicated region
    $region14: #{tpu_custom_call.1} parent=1 // pred_check
      _
    $region15: #{tpu_custom_call.1} parent=1 // pred_check_branch
      %37 = sbr.rel (0) target = $region17
    $region16: #{tpu_custom_call.1} parent=1 // pred_region
      %39 = dma.done [#allocation6], 64
    $region17: #{tpu_custom_call.1} parent=1 // pred_fallthru
      _
    %v40 = vld [vmem:[#allocation2] sm:$0x3]
    %v41 = vld [vmem:[#allocation5] sm:$0xf]
    %vm42 = vcmask 130048
    %v44 = vsel %vm42, %v40, 0
    %v47 = vsel %vm42, %v41, 0
    %49 = vmatpush.xpose.msra.mxu0 0.0
    %50 = vmatpush.xpose.msra.mxu0 0.0
    %51 = vmatpush.xpose.msra.mxu0 0.0
    %52 = vmatpush.xpose.msra.mxu0 0.0
    %53 = vmatpush.xpose.msra.mxu0 0.0
    %54 = vmatpush.xpose.msra.mxu0 0.0
    %55 = vmatpush.xpose.msra.mxu0 0.0
    %56 = vmatpush.xpose.msra.mxu0 0.0
    %57 = vmatpush.xpose.msra.mxu0 0.0
    %58 = vmatpush.xpose.msra.mxu0 0.0
    %59 = vmatpush.xpose.msra.mxu0 0.0
    %60 = vmatpush.xpose.msra.mxu0 0.0
    %61 = vmatpush.xpose.msra.mxu0 0.0
    %62 = vmatpush.xpose.msra.mxu0 0.0
    %63 = vmatpush.xpose.msra.mxu0 0.0
    %64 = vmatpush.xpose.msra.mxu0 %v47
    %65 = vmatmul.f32.gmra.mxu0 %v44
    %v66 = vpop.f32.mrf.mxu0
    %v67 = vadd.f32 0.0, %v66
    %68 = vdwg.mxu0
    %vm69 = vcmask 25600
    %70 = vst.msk [vmem:[#allocation7] sm:$0x3] %vm69, %v67
    // Predicated region
    $region18: #{tpu_custom_call.1} parent=1 // pred_check
      _
    $region19: #{tpu_custom_call.1} parent=1 // pred_check_branch
      %72 = sbr.rel (0) target = $region21
    $region20: #{tpu_custom_call.1} parent=1 // pred_region
      %74 = vsyncadd [#allocation4], 0
      %s76 = sshll.u32 [#allocation7], 4
      %s77 = int_to_ptr.vmem [resolvable:$true] %s76
      %s78 = sshll.u32 %s2, 4
      %s79 = int_to_ptr.hbm [resolvable:$true] %s78
      %81 = dma.vmem_to_hbm [thread:$0]  %s77, 32, %s79, [#allocation4]
    $region21: #{tpu_custom_call.1} parent=1 // pred_fallthru
      _
    // Predicated region
    $region22: #{tpu_custom_call.1} parent=1 // pred_check
      _
    $region23: #{tpu_custom_call.1} parent=1 // pred_check_branch
      %83 = sbr.rel (0) target = $region25
    $region24: #{tpu_custom_call.1} parent=1 // pred_region
      %85 = dma.done [#allocation4], 32
    $region25: #{tpu_custom_call.1} parent=1 // pred_fallthru
      _
    %86 = vsyncpa [#allocation3], 1
    %87 = vsyncpa [#allocation6], 1
    %88 = vsyncpa [#allocation4], 1

</llo_original>
